<compile_context>
chip_gen: v6e
topology: v6e:2x2x1
jax: 0.10.0
libtpu: 0.0.40
codegen_flags: <defaults>
</compile_context>

<pallas_src>
import functools

import jax
import jax.numpy as jnp
from jax.experimental import pallas as pl
from jax.experimental.pallas import tpu as pltpu


def _attention_kernel(lengths_ref,                       # SMEM (Bp,) int32
                      q_ref, awcu_ref, pm_ref, mem_ref,  # batched inputs
                      wq_ref, comb_ref, v_ref,           # weights (resident)
                      ctx_ref, attw_ref, *, Bb, T, K2):
    b0 = pl.program_id(0) * Bb

    # ---- processed_query = query_layer(query): (Bb, R) @ (R, A) -> (Bb, A) ----
    pq = jnp.dot(q_ref[...], wq_ref[...], preferred_element_type=jnp.float32)

    # ---- fused location conv + location_dense: one im2col matmul --------------
    #      (Bb*T, 2K) @ (2K, A) -> (Bb, T, A)
    awcu = awcu_ref[...].reshape(Bb * T, K2)
    paw = jnp.dot(awcu, comb_ref[...], preferred_element_type=jnp.float32)
    paw = paw.reshape(Bb, T, -1)

    # ---- energies = v(tanh(pq + paw + pm)) ------------------------------------
    x = jnp.tanh(pq[:, None, :] + paw + pm_ref[...])           # (Bb, T, A)
    e = jnp.sum(x * v_ref[...], axis=-1)                       # (Bb, T), lane reduce

    # ---- mask from scalar-prefetched lengths (time on the lane axis) ----------
    t_idx = jax.lax.broadcasted_iota(jnp.int32, (Bb, T), 1)
    row_idx = jax.lax.broadcasted_iota(jnp.int32, (Bb, T), 0)
    len_mat = jnp.full((Bb, T), T, jnp.int32)
    for i in range(Bb):                                        # Bb small & static
        len_mat = jnp.where(row_idx == i, lengths_ref[b0 + i], len_mat)
    # large finite negative instead of -inf: identical softmax result, no NaN
    # even for an all-masked (padded) batch row.
    e = jnp.where(t_idx >= len_mat, jnp.float32(-1e30), e)

    # ---- softmax over time (lane reduction) -----------------------------------
    m = jnp.max(e, axis=-1, keepdims=True)
    p = jnp.exp(e - m)
    w = p / jnp.sum(p, axis=-1, keepdims=True)                 # (Bb, T)

    # ---- attention_context = attn_weights @ memory (batched MXU matmul) -------
    ctx = jnp.einsum("bqt,bte->bqe", w[:, None, :], mem_ref[...],
                     preferred_element_type=jnp.float32)       # (Bb, 1, E)

    ctx_ref[...] = ctx[:, 0, :]
    attw_ref[...] = w


def attention_forward(query, memory, processed_memory, attention_weights_cat,
                      mask_bool, params):
    """Pallas implementation of Attention.forward.

    query: (B, R), memory: (B, T, E), processed_memory: (B, T, A),
    attention_weights_cat: (B, 2, T), mask_bool: (B, T) bool (True = padded).
    Returns (attention_context (B, E), attention_weights (B, T)).
    """
    wq, conv_w, loc_dense_w, v_w = (params["wq"], params["conv_w"],
                                    params["loc_dense_w"], params["v_w"])
    B, R = query.shape
    _, T, E = memory.shape
    A = wq.shape[0]
    _, _, K = conv_w.shape
    pad = (K - 1) // 2
    K2 = 2 * K
    f32 = jnp.float32

    # Batch block: process several rows per grid step (sublane/MXU fill,
    # amortize per-step overhead).  Keep Bb==B (full) or a multiple of 8.
    if B <= 8:
        Bb, Bp = B, B
    else:
        Bb = 8
        Bp = -(-B // Bb) * Bb

    q_in = query.astype(f32)
    pm_in = processed_memory.astype(f32)
    mem_in = memory.astype(f32)
    # TODO(synk): at realistic T (500-1000) cast memory/processed_memory to bf16
    # to halve the dominant HBM streams; kept f32 here for 1e-5 parity with the
    # f32 reference check.

    # im2col of the (zero-padded) attention weights: awc_unfold[b,t,c*K+k]
    awc_pad = jnp.pad(attention_weights_cat.astype(f32),
                      ((0, 0), (0, 0), (pad, pad)))            # (B, 2, T+2*pad)
    cols = jnp.stack([awc_pad[:, :, k:k + T] for k in range(K)], axis=2)  # (B,2,K,T)
    awc_unfold = jnp.transpose(cols, (0, 3, 1, 2)).reshape(B, T, K2)      # (B,T,2K)

    # Algebraic fusion of location_conv with location_dense:
    # comb[c,k,a] = sum_f loc_dense_w[a,f] * conv_w[f,c,k]
    comb2d = jnp.einsum("af,fck->cka", loc_dense_w.astype(f32),
                        conv_w.astype(f32)).reshape(K2, A)
    wq_t = jnp.transpose(wq).astype(f32)                       # (R, A)
    v_row = v_w.astype(f32)                                    # (1, A)

    # NOTE: assumes mask_bool marks a padded tail (True = padded), as produced by
    # Tacotron2's get_mask_from_lengths; converted to per-row lengths for SMEM.
    lengths = jnp.sum(jnp.logical_not(mask_bool), axis=1).astype(jnp.int32)

    pad_b = Bp - B
    if pad_b:
        q_in = jnp.pad(q_in, ((0, pad_b), (0, 0)))
        pm_in = jnp.pad(pm_in, ((0, pad_b), (0, 0), (0, 0)))
        mem_in = jnp.pad(mem_in, ((0, pad_b), (0, 0), (0, 0)))
        awc_unfold = jnp.pad(awc_unfold, ((0, pad_b), (0, 0), (0, 0)))
        lengths = jnp.pad(lengths, ((0, pad_b),))

    kernel = functools.partial(_attention_kernel, Bb=Bb, T=T, K2=K2)

    ctx, attw = pl.pallas_call(
        kernel,
        out_shape=(jax.ShapeDtypeStruct((Bp, E), f32),
                   jax.ShapeDtypeStruct((Bp, T), f32)),
        grid_spec=pltpu.PrefetchScalarGridSpec(
            num_scalar_prefetch=1,                 # lengths -> SMEM
            grid=(Bp // Bb,),
            in_specs=[
                pl.BlockSpec((Bb, R), lambda b, L: (b, 0)),        # query
                pl.BlockSpec((Bb, T, K2), lambda b, L: (b, 0, 0)), # awc im2col
                pl.BlockSpec((Bb, T, A), lambda b, L: (b, 0, 0)),  # processed_memory
                pl.BlockSpec((Bb, T, E), lambda b, L: (b, 0, 0)),  # memory
                pl.BlockSpec((R, A), lambda b, L: (0, 0)),         # wq_t
                pl.BlockSpec((K2, A), lambda b, L: (0, 0)),        # fused conv+dense
                pl.BlockSpec((1, A), lambda b, L: (0, 0)),         # v row
            ],
            out_specs=[
                pl.BlockSpec((Bb, E), lambda b, L: (b, 0)),        # context
                pl.BlockSpec((Bb, T), lambda b, L: (b, 0)),        # attn weights (lane-dense)
            ],
        ),
        compiler_params=pltpu.CompilerParams(
            dimension_semantics=("parallel",)),
    )(lengths, q_in, awc_unfold, pm_in, mem_in, wq_t, comb2d, v_row)

    return ctx[:B], attw[:B]


def attention_reference(query, memory, processed_memory, attention_weights_cat,
                        mask_bool, params):
    """Pure-JAX reference mirroring the PyTorch module."""
    wq, conv_w, loc_dense_w, v_w = (params["wq"], params["conv_w"],
                                    params["loc_dense_w"], params["v_w"])
    K = conv_w.shape[2]
    pad = (K - 1) // 2
    pq = query @ wq.T                                              # (B, A)
    loc = jax.lax.conv_general_dilated(
        attention_weights_cat, conv_w, window_strides=(1,),
        padding=[(pad, pad)],
        dimension_numbers=("NCH", "OIH", "NCH"))                   # (B, F, T)
    paw = jnp.einsum("bft,af->bta", loc, loc_dense_w)              # (B, T, A)
    x = jnp.tanh(pq[:, None, :] + paw + processed_memory)          # (B, T, A)
    energies = jnp.einsum("bta,oa->bto", x, v_w)[..., 0]           # (B, T)
    energies = jnp.where(mask_bool, -jnp.inf, energies)
    attw = jax.nn.softmax(energies, axis=1)                        # (B, T)
    ctx = jnp.einsum("bt,bte->be", attw, memory)                   # (B, E)
    return ctx, attw


if __name__ == "__main__":
    # Small, shape-consistent config.
    B, T = 2, 16
    R = 32    # attention_rnn_dim
    E = 32    # embedding_dim
    A = 32    # attention_dim
    F = 8     # attention_location_n_filters
    K = 5     # attention_location_kernel_size (odd)

    key = jax.random.PRNGKey(0)
    ks = jax.random.split(key, 8)

    params = {
        "wq": jax.random.normal(ks[0], (A, R), jnp.float32) * 0.1,          # query_layer.weight
        "conv_w": jax.random.normal(ks[1], (F, 2, K), jnp.float32) * 0.1,   # location_conv.weight
        "loc_dense_w": jax.random.normal(ks[2], (A, F), jnp.float32) * 0.1, # location_dense.weight
        "v_w": jax.random.normal(ks[3], (1, A), jnp.float32) * 0.1,         # v.weight
    }

    query = jax.random.normal(ks[4], (B, R), jnp.float32)
    memory = jax.random.normal(ks[5], (B, T, E), jnp.float32)
    processed_memory = jax.random.normal(ks[6], (B, T, A), jnp.float32)
    aw_prev = jax.nn.softmax(jax.random.normal(ks[7], (B, T), jnp.float32), axis=1)
    attention_weights_cat = jnp.stack([aw_prev, jnp.cumsum(aw_prev, axis=1)], axis=1)  # (B, 2, T)

    lengths = jnp.array([T, T - 4], dtype=jnp.int32)
    mask_bool = jnp.arange(T)[None, :] >= lengths[:, None]          # True = padded

    ctx, attw = attention_forward(query, memory, processed_memory,
                                  attention_weights_cat, mask_bool, params)
    jax.block_until_ready((ctx, attw))

    ctx_ref, attw_ref = attention_reference(query, memory, processed_memory,
                                            attention_weights_cat, mask_bool, params)

    assert ctx.shape == (B, E) and attw.shape == (B, T)
    assert jnp.allclose(ctx, ctx_ref, rtol=1e-5, atol=1e-5)
    assert jnp.allclose(attw, attw_ref, rtol=1e-5, atol=1e-5)
    print("KERNEL_OK")
</pallas_src>

<mosaic_0001>
module attributes {stable_mosaic.version = 11 : i64} {
  func.func @_attention_kernel(%arg0: i32, %arg1: memref<2xi32, #tpu.memory_space<smem>>, %arg2: memref<2x32xf32, #tpu.memory_space<vmem>>, %arg3: memref<2x16x10xf32, #tpu.memory_space<vmem>>, %arg4: memref<2x16x32xf32, #tpu.memory_space<vmem>>, %arg5: memref<2x16x32xf32, #tpu.memory_space<vmem>>, %arg6: memref<32x32xf32, #tpu.memory_space<vmem>>, %arg7: memref<10x32xf32, #tpu.memory_space<vmem>>, %arg8: memref<1x32xf32, #tpu.memory_space<vmem>>, %arg9: memref<2x32xf32, #tpu.memory_space<vmem>>, %arg10: memref<2x16xf32, #tpu.memory_space<vmem>>) attributes {dimension_semantics = [#tpu.dimension_semantics<parallel>], iteration_bounds = array<i64: 1>, scalar_prefetch = 1 : i64, scratch_operands = 0 : i64, tpu.core_type = #tpu.core_type<tc>, window_params = [{transform_indices = @transform_0, window_bounds = array<i64: 2, 32>}, {transform_indices = @transform_1, window_bounds = array<i64: 2, 16, 10>}, {transform_indices = @transform_2, window_bounds = array<i64: 2, 16, 32>}, {transform_indices = @transform_3, window_bounds = array<i64: 2, 16, 32>}, {pipeline_mode = #tpu.pipeline_mode<synchronous>, transform_indices = @transform_4, window_bounds = array<i64: 32, 32>}, {pipeline_mode = #tpu.pipeline_mode<synchronous>, transform_indices = @transform_5, window_bounds = array<i64: 10, 32>}, {pipeline_mode = #tpu.pipeline_mode<synchronous>, transform_indices = @transform_6, window_bounds = array<i64: 1, 32>}, {transform_indices = @transform_7, window_bounds = array<i64: 2, 32>}, {transform_indices = @transform_8, window_bounds = array<i64: 2, 16>}]} {
    %c2_i32 = arith.constant 2 : i32
    %0 = arith.muli %arg0, %c2_i32 : i32
    %c0 = arith.constant 0 : index
    %c0_0 = arith.constant 0 : index
    %1 = vector.load %arg2[%c0, %c0_0] : memref<2x32xf32, #tpu.memory_space<vmem>>, vector<2x32xf32>
    %c0_1 = arith.constant 0 : index
    %c0_2 = arith.constant 0 : index
    %2 = vector.load %arg6[%c0_1, %c0_2] : memref<32x32xf32, #tpu.memory_space<vmem>>, vector<32x32xf32>
    %cst = arith.constant dense<0.000000e+00> : vector<2x32xf32>
    %3 = tpu.matmul %1, %2, %cst {dimension_numbers = #tpu.dot_dimension_numbers<[1], [0], [0], [1], [0, 0, 1, 1], [], []>} : vector<2x32xf32>, vector<32x32xf32>, vector<2x32xf32> -> vector<2x32xf32>
    %c0_3 = arith.constant 0 : index
    %c0_4 = arith.constant 0 : index
    %c0_5 = arith.constant 0 : index
    %4 = vector.load %arg3[%c0_3, %c0_4, %c0_5] : memref<2x16x10xf32, #tpu.memory_space<vmem>>, vector<2x16x10xf32>
    %5 = vector.shape_cast %4 : vector<2x16x10xf32> to vector<32x10xf32>
    %c0_6 = arith.constant 0 : index
    %c0_7 = arith.constant 0 : index
    %6 = vector.load %arg7[%c0_6, %c0_7] : memref<10x32xf32, #tpu.memory_space<vmem>>, vector<10x32xf32>
    %cst_8 = arith.constant dense<0.000000e+00> : vector<32x32xf32>
    %7 = tpu.matmul %5, %6, %cst_8 {dimension_numbers = #tpu.dot_dimension_numbers<[1], [0], [0], [1], [0, 0, 1, 1], [], []>} : vector<32x10xf32>, vector<10x32xf32>, vector<32x32xf32> -> vector<32x32xf32>
    %8 = vector.shape_cast %7 : vector<32x32xf32> to vector<2x16x32xf32>
    %9 = vector.shape_cast %3 : vector<2x32xf32> to vector<2x1x32xf32>
    %10 = vector.broadcast %9 : vector<2x1x32xf32> to vector<2x16x32xf32>
    %11 = arith.addf %10, %8 : vector<2x16x32xf32>
    %c0_9 = arith.constant 0 : index
    %c0_10 = arith.constant 0 : index
    %c0_11 = arith.constant 0 : index
    %12 = vector.load %arg4[%c0_9, %c0_10, %c0_11] : memref<2x16x32xf32, #tpu.memory_space<vmem>>, vector<2x16x32xf32>
    %13 = arith.addf %11, %12 : vector<2x16x32xf32>
    %14 = math.tanh %13 : vector<2x16x32xf32>
    %c0_12 = arith.constant 0 : index
    %c0_13 = arith.constant 0 : index
    %15 = vector.load %arg8[%c0_12, %c0_13] : memref<1x32xf32, #tpu.memory_space<vmem>>, vector<1x32xf32>
    %16 = vector.shape_cast %15 : vector<1x32xf32> to vector<1x1x32xf32>
    %17 = vector.broadcast %16 : vector<1x1x32xf32> to vector<2x16x32xf32>
    %18 = arith.mulf %14, %17 : vector<2x16x32xf32>
    %cst_14 = arith.constant dense<0.000000e+00> : vector<2x16xf32>
    %19 = vector.multi_reduction <add>, %18, %cst_14 [2] : vector<2x16x32xf32> to vector<2x16xf32>
    %20 = tpu.iota {dimensions = array<i32: 1>} : vector<2x16xi32>
    %21 = tpu.iota {dimensions = array<i32: 0>} : vector<2x16xi32>
    %c16_i32 = arith.constant 16 : i32
    %22 = vector.broadcast %c16_i32 : i32 to vector<2x16xi32>
    %c0_i32 = arith.constant 0 : i32
    %23 = vector.broadcast %c0_i32 : i32 to vector<2x16xi32>
    %24 = arith.cmpi eq, %21, %23 : vector<2x16xi32>
    %c0_i32_15 = arith.constant 0 : i32
    %25 = arith.addi %0, %c0_i32_15 : i32
    %26 = arith.index_cast %25 : i32 to index
    %27 = memref.load %arg1[%26] : memref<2xi32, #tpu.memory_space<smem>>
    %28 = vector.broadcast %27 : i32 to vector<2x16xi32>
    %29 = arith.select %24, %28, %22 : vector<2x16xi1>, vector<2x16xi32>
    %c1_i32 = arith.constant 1 : i32
    %30 = vector.broadcast %c1_i32 : i32 to vector<2x16xi32>
    %31 = arith.cmpi eq, %21, %30 : vector<2x16xi32>
    %c1_i32_16 = arith.constant 1 : i32
    %32 = arith.addi %0, %c1_i32_16 : i32
    %33 = arith.index_cast %32 : i32 to index
    %34 = memref.load %arg1[%33] : memref<2xi32, #tpu.memory_space<smem>>
    %35 = vector.broadcast %34 : i32 to vector<2x16xi32>
    %36 = arith.select %31, %35, %29 : vector<2x16xi1>, vector<2x16xi32>
    %37 = arith.cmpi sge, %20, %36 : vector<2x16xi32>
    %cst_17 = arith.constant -1.000000e+30 : f32
    %38 = vector.broadcast %cst_17 : f32 to vector<2x16xf32>
    %39 = arith.select %37, %38, %19 : vector<2x16xi1>, vector<2x16xf32>
    %cst_18 = arith.constant dense<0xFF800000> : vector<2xf32>
    %40 = vector.multi_reduction <maximumf>, %39, %cst_18 [1] : vector<2x16xf32> to vector<2xf32>
    %41 = vector.shape_cast %40 : vector<2xf32> to vector<2x1xf32>
    %42 = vector.broadcast %41 : vector<2x1xf32> to vector<2x16xf32>
    %43 = arith.subf %39, %42 : vector<2x16xf32>
    %44 = math.exp %43 : vector<2x16xf32>
    %cst_19 = arith.constant dense<0.000000e+00> : vector<2xf32>
    %45 = vector.multi_reduction <add>, %44, %cst_19 [1] : vector<2x16xf32> to vector<2xf32>
    %46 = vector.shape_cast %45 : vector<2xf32> to vector<2x1xf32>
    %47 = vector.broadcast %46 : vector<2x1xf32> to vector<2x16xf32>
    %48 = arith.divf %44, %47 : vector<2x16xf32>
    %49 = vector.shape_cast %48 : vector<2x16xf32> to vector<2x1x16xf32>
    %c0_20 = arith.constant 0 : index
    %c0_21 = arith.constant 0 : index
    %c0_22 = arith.constant 0 : index
    %50 = vector.load %arg5[%c0_20, %c0_21, %c0_22] : memref<2x16x32xf32, #tpu.memory_space<vmem>>, vector<2x16x32xf32>
    "tpu.trace_start"() <{level = 10 : i32, message = "bqt,bte->bqe"}> : () -> ()
    %cst_23 = arith.constant dense<0.000000e+00> : vector<2x1x32xf32>
    %51 = tpu.matmul %49, %50, %cst_23 {dimension_numbers = #tpu.dot_dimension_numbers<[2], [1], [1], [2], [0, 0, 0, 1, 1, 2], [0], [0]>} : vector<2x1x16xf32>, vector<2x16x32xf32>, vector<2x1x32xf32> -> vector<2x1x32xf32>
    "tpu.trace_stop"() : () -> ()
    %52 = vector.shape_cast %51 : vector<2x1x32xf32> to vector<2x32xf32>
    %c0_24 = arith.constant 0 : index
    %c0_25 = arith.constant 0 : index
    %53 = vector.load %arg9[%c0_24, %c0_25] : memref<2x32xf32, #tpu.memory_space<vmem>>, vector<2x32xf32>
    tpu.vector_store %arg9[%c0_24, %c0_25], %52 {strides = array<i32>} : memref<2x32xf32, #tpu.memory_space<vmem>>, vector<2x32xf32>,
    %c0_26 = arith.constant 0 : index
    %c0_27 = arith.constant 0 : index
    %54 = vector.load %arg10[%c0_26, %c0_27] : memref<2x16xf32, #tpu.memory_space<vmem>>, vector<2x16xf32>
    tpu.vector_store %arg10[%c0_26, %c0_27], %48 {strides = array<i32>} : memref<2x16xf32, #tpu.memory_space<vmem>>, vector<2x16xf32>,
    return
  }
  func.func @transform_0(%arg0: i32, %arg1: memref<2xi32, #tpu.memory_space<smem>>) -> (i32, i32) {
    %c0_i32 = arith.constant 0 : i32
    %c0_i32_0 = arith.constant 0 : i32
    return %arg0, %c0_i32 : i32, i32
  }
  func.func @transform_1(%arg0: i32, %arg1: memref<2xi32, #tpu.memory_space<smem>>) -> (i32, i32, i32) {
    %c0_i32 = arith.constant 0 : i32
    %c0_i32_0 = arith.constant 0 : i32
    %c0_i32_1 = arith.constant 0 : i32
    return %arg0, %c0_i32, %c0_i32_0 : i32, i32, i32
  }
  func.func @transform_2(%arg0: i32, %arg1: memref<2xi32, #tpu.memory_space<smem>>) -> (i32, i32, i32) {
    %c0_i32 = arith.constant 0 : i32
    %c0_i32_0 = arith.constant 0 : i32
    %c0_i32_1 = arith.constant 0 : i32
    return %arg0, %c0_i32, %c0_i32_0 : i32, i32, i32
  }
  func.func @transform_3(%arg0: i32, %arg1: memref<2xi32, #tpu.memory_space<smem>>) -> (i32, i32, i32) {
    %c0_i32 = arith.constant 0 : i32
    %c0_i32_0 = arith.constant 0 : i32
    %c0_i32_1 = arith.constant 0 : i32
    return %arg0, %c0_i32, %c0_i32_0 : i32, i32, i32
  }
  func.func @transform_4(%arg0: i32, %arg1: memref<2xi32, #tpu.memory_space<smem>>) -> (i32, i32) {
    %c0_i32 = arith.constant 0 : i32
    %c0_i32_0 = arith.constant 0 : i32
    %c0_i32_1 = arith.constant 0 : i32
    return %c0_i32, %c0_i32_0 : i32, i32
  }
  func.func @transform_5(%arg0: i32, %arg1: memref<2xi32, #tpu.memory_space<smem>>) -> (i32, i32) {
    %c0_i32 = arith.constant 0 : i32
    %c0_i32_0 = arith.constant 0 : i32
    %c0_i32_1 = arith.constant 0 : i32
    return %c0_i32, %c0_i32_0 : i32, i32
  }
  func.func @transform_6(%arg0: i32, %arg1: memref<2xi32, #tpu.memory_space<smem>>) -> (i32, i32) {
    %c0_i32 = arith.constant 0 : i32
    %c0_i32_0 = arith.constant 0 : i32
    %c0_i32_1 = arith.constant 0 : i32
    return %c0_i32, %c0_i32_0 : i32, i32
  }
  func.func @transform_7(%arg0: i32, %arg1: memref<2xi32, #tpu.memory_space<smem>>) -> (i32, i32) {
    %c0_i32 = arith.constant 0 : i32
    %c0_i32_0 = arith.constant 0 : i32
    return %arg0, %c0_i32 : i32, i32
  }
  func.func @transform_8(%arg0: i32, %arg1: memref<2xi32, #tpu.memory_space<smem>>) -> (i32, i32) {
    %c0_i32 = arith.constant 0 : i32
    %c0_i32_0 = arith.constant 0 : i32
    return %arg0, %c0_i32 : i32, i32
  }
}

</mosaic_0001>

<llo_original>
// kernel: tpu_custom_call.1
$region0: #{tpu_custom_call.1}
  #allocation0 [shape = 'u32[]', space=smem, size = 0x4, offset = 0x4, fixed_abs, tag = 'smem constant byte address 0x4 - core index']
  #allocation1 [shape = 'u32[144,128]{1,0:T(1,128)}', space=vmem, size = 0x12000, scoped, tag = 'internal scratch']
  #allocation2 [shape = 's32[1]{0}', space=sflag, size = 0x4, scoped, tag = 'scoped memory for tpu_custom_call.1']
  #allocation3 [shape = 'u8[512]{0}', space=smem, size = 0x200, scoped, tag = 'prefetched SMEM operand 0']
  %s0 = inlined_call_operand.vmem [shape: s32[2], index: 0, kind: input, shape index: {}]
  %s1 = inlined_call_operand.vmem [shape: f32[2,32], index: 1, kind: input, shape index: {}]
  %s2 = inlined_call_operand.vmem [shape: f32[2,16,10], index: 2, kind: input, shape index: {}]
  %s3 = inlined_call_operand.vmem [shape: f32[2,16,32], index: 3, kind: input, shape index: {}]
  %s4 = inlined_call_operand.hbm [shape: f32[2,16,32], index: 4, kind: input, shape index: {}]
  %s5 = inlined_call_operand.hbm [shape: f32[32,32], index: 5, kind: input, shape index: {}]
  %s6 = inlined_call_operand.vmem [shape: f32[10,32], index: 6, kind: input, shape index: {}]
  %s7 = inlined_call_operand.vmem [shape: f32[1,32], index: 7, kind: input, shape index: {}]
  %s8 = inlined_call_operand.hbm [shape: f32[2,32], index: 8, kind: output, shape index: {0}]
  %s9 = inlined_call_operand.hbm [shape: f32[2,16], index: 9, kind: output, shape index: {1}]
  %10 = xla_tuple %s8, %s9
  %s11 = sld [smem:[#allocation0]]
  $region54: #{tpu_custom_call.1} parent=0
    _
  %s13 = ssub.s32 1, %s11
  %s14 = scalar_select 0, %s13, %s11
  %s15 = sshll.u32 %s0, 4
  %s16 = int_to_ptr.vmem [resolvable:$true] %s15
  %18 = dma.vmem_to_smem %s16, 16, [#allocation3], [#allocation2]
  %19 = dma.done [#allocation2], 16
  %20 = sfence
  $region1: #{tpu_custom_call.1} parent=0
    #allocation4 [shape = 'u8[16384]{0}', space=vmem, size = 0x4000, scoped, tag = 'input window, operand 4, single buffered']
    #allocation5 [shape = 's32[1]{0}', space=sflag, size = 0x4, scoped, tag = 'scoped memory for tpu_custom_call.1']
    #allocation6 [shape = 's32[1]{0}', space=sflag, size = 0x4, scoped, tag = 'scoped memory for tpu_custom_call.1']
    #allocation7 [shape = 'u8[16384]{0}', space=vmem, size = 0x4000, scoped, tag = 'input window, operand 5, single buffered']
    #allocation8 [shape = 's32[1]{0}', space=sflag, size = 0x4, scoped, tag = 'scoped memory for tpu_custom_call.1']
    #allocation9 [shape = 'u8[1024]{0}', space=vmem, size = 0x400, scoped, tag = 'output window, operand 0, single buffered']
    #allocation10 [shape = 'u8[1024]{0}', space=vmem, size = 0x400, scoped, tag = 'output window, operand 1, single buffered']
    #allocation11 [shape = 's32[1]{0}', space=sflag, size = 0x4, scoped, tag = 'scoped memory for tpu_custom_call.1']
    %21 = vsyncpa [#allocation5], 0
    %22 = vsyncpa [#allocation8], 0
    %23 = vsyncpa [#allocation6], 0
    %24 = vsyncpa [#allocation11], 0
    // Predicated region
    $region2: #{tpu_custom_call.1} parent=1 // pred_check
      _
    $region3: #{tpu_custom_call.1} parent=1 // pred_check_branch
      %26 = sbr.rel (0) target = $region5
    $region4: #{tpu_custom_call.1} parent=1 // pred_region
      _
    $region5: #{tpu_custom_call.1} parent=1 // pred_fallthru
      _
    // Predicated region
    $region6: #{tpu_custom_call.1} parent=1 // pred_check
      _
    $region7: #{tpu_custom_call.1} parent=1 // pred_check_branch
      %28 = sbr.rel (0) target = $region9
    $region8: #{tpu_custom_call.1} parent=1 // pred_region
      _
    $region9: #{tpu_custom_call.1} parent=1 // pred_fallthru
      _
    // Predicated region
    $region10: #{tpu_custom_call.1} parent=1 // pred_check
      _
    $region11: #{tpu_custom_call.1} parent=1 // pred_check_branch
      %30 = sbr.rel (0) target = $region13
    $region12: #{tpu_custom_call.1} parent=1 // pred_region
      _
    $region13: #{tpu_custom_call.1} parent=1 // pred_fallthru
      _
    // Predicated region
    $region14: #{tpu_custom_call.1} parent=1 // pred_check
      _
    $region15: #{tpu_custom_call.1} parent=1 // pred_check_branch
      %32 = sbr.rel (0) target = $region17
    $region16: #{tpu_custom_call.1} parent=1 // pred_region
      %s34 = ssub.s32 512, 512
      %35 = vsyncadd [#allocation5], %s34
      %s36 = sshll.u32 [#allocation4], 4
      %s37 = int_to_ptr.vmem [resolvable:$true] %s36
      %42 = dma.hbm_to_vmem [thread:$0]  %s4, 512, %s37, [#allocation5], 128, 128, 8
    $region17: #{tpu_custom_call.1} parent=1 // pred_fallthru
      _
    // Predicated region
    $region18: #{tpu_custom_call.1} parent=1 // pred_check
      _
    $region19: #{tpu_custom_call.1} parent=1 // pred_check_branch
      %44 = sbr.rel (0) target = $region21
    $region20: #{tpu_custom_call.1} parent=1 // pred_region
      %s46 = ssub.s32 512, 512
      %47 = vsyncadd [#allocation8], %s46
      %s48 = sshll.u32 [#allocation7], 4
      %s49 = int_to_ptr.vmem [resolvable:$true] %s48
      %54 = dma.hbm_to_vmem [thread:$0]  %s5, 512, %s49, [#allocation8], 128, 128, 8
    $region21: #{tpu_custom_call.1} parent=1 // pred_fallthru
      _
    // Predicated region
    $region22: #{tpu_custom_call.1} parent=1 // pred_check
      _
    $region23: #{tpu_custom_call.1} parent=1 // pred_check_branch
      %56 = sbr.rel (0) target = $region25
    $region24: #{tpu_custom_call.1} parent=1 // pred_region
      _
    $region25: #{tpu_custom_call.1} parent=1 // pred_fallthru
      _
    // Predicated region
    $region26: #{tpu_custom_call.1} parent=1 // pred_check
      _
    $region27: #{tpu_custom_call.1} parent=1 // pred_check_branch
      %58 = sbr.rel (0) target = $region29
    $region28: #{tpu_custom_call.1} parent=1 // pred_region
      _
    $region29: #{tpu_custom_call.1} parent=1 // pred_fallthru
      _
    // Predicated region
    $region30: #{tpu_custom_call.1} parent=1 // pred_check
      _
    $region31: #{tpu_custom_call.1} parent=1 // pred_check_branch
      %60 = sbr.rel (0) target = $region33
    $region32: #{tpu_custom_call.1} parent=1 // pred_region
      %61 = dma.done [#allocation5], 512
    $region33: #{tpu_custom_call.1} parent=1 // pred_fallthru
      _
    // Predicated region
    $region34: #{tpu_custom_call.1} parent=1 // pred_check
      _
    $region35: #{tpu_custom_call.1} parent=1 // pred_check_branch
      %63 = sbr.rel (0) target = $region37
    $region36: #{tpu_custom_call.1} parent=1 // pred_region
      %64 = dma.done [#allocation8], 512
    $region37: #{tpu_custom_call.1} parent=1 // pred_fallthru
      _
    %s65 = smul.u32 0, 2
    %v66 = vld [vmem:[%s1] sm:$0x3]
    %v67 = vld [vmem:[#allocation7] sm:$0xff]
    %v68 = vld [vmem:[#allocation7 + $0x8] sm:$0xff]
    %v69 = vld [vmem:[#allocation7 + $0x10] sm:$0xff]
    %v70 = vld [vmem:[#allocation7 + $0x18] sm:$0xff]
    %vm71 = vcmask 261120
    %v73 = vsel %vm71, %v66, 0
    %75 = vmatprep.subr.mxu0 0.0
    %76 = vmatpush1.msra.mxu0 0.0
    %77 = vmatprep.subr.mxu0 0.0
    %78 = vmatpush1.msra.mxu0 0.0
    %79 = vmatprep.subr.mxu0 0.0
    %80 = vmatpush1.msra.mxu0 0.0
    %81 = vmatprep.subr.mxu0 0.0
    %82 = vmatpush1.msra.mxu0 0.0
    %83 = vmatprep.subr.mxu0 0.0
    %84 = vmatpush1.msra.mxu0 0.0
    %85 = vmatprep.subr.mxu0 0.0
    %86 = vmatpush1.msra.mxu0 0.0
    %87 = vmatprep.subr.mxu0 0.0
    %88 = vmatpush1.msra.mxu0 0.0
    %89 = vmatprep.subr.mxu0 0.0
    %90 = vmatpush1.msra.mxu0 0.0
    %91 = vmatprep.subr.mxu0 0.0
    %92 = vmatpush1.msra.mxu0 0.0
    %93 = vmatprep.subr.mxu0 0.0
    %94 = vmatpush1.msra.mxu0 0.0
    %95 = vmatprep.subr.mxu0 0.0
    %96 = vmatpush1.msra.mxu0 0.0
    %97 = vmatprep.subr.mxu0 0.0
    %98 = vmatpush1.msra.mxu0 0.0
    %99 = vmatprep.subr.mxu0 0.0
    %100 = vmatpush1.msra.mxu0 %v70
    %101 = vmatprep.subr.mxu0 0.0
    %102 = vmatpush1.msra.mxu0 %v69
    %103 = vmatprep.subr.mxu0 0.0
    %104 = vmatpush1.msra.mxu0 %v68
    %105 = vmatprep.subr.mxu0 0.0
    %106 = vmatpush1.msra.mxu0 %v67
    %107 = vmatprep.subr.mxu0 0.0
    %108 = vmatpush2.msra.mxu0 0.0
    %109 = vmatprep.subr.mxu0 0.0
    %110 = vmatpush2.msra.mxu0 0.0
    %111 = vmatprep.subr.mxu0 0.0
    %112 = vmatpush2.msra.mxu0 0.0
    %113 = vmatprep.subr.mxu0 0.0
    %114 = vmatpush2.msra.mxu0 0.0
    %115 = vmatprep.subr.mxu0 0.0
    %116 = vmatpush2.msra.mxu0 0.0
    %117 = vmatprep.subr.mxu0 0.0
    %118 = vmatpush2.msra.mxu0 0.0
    %119 = vmatprep.subr.mxu0 0.0
    %120 = vmatpush2.msra.mxu0 0.0
    %121 = vmatprep.subr.mxu0 0.0
    %122 = vmatpush2.msra.mxu0 0.0
    %123 = vmatprep.subr.mxu0 0.0
    %124 = vmatpush2.msra.mxu0 0.0
    %125 = vmatprep.subr.mxu0 0.0
    %126 = vmatpush2.msra.mxu0 0.0
    %127 = vmatprep.subr.mxu0 0.0
    %128 = vmatpush2.msra.mxu0 0.0
    %129 = vmatprep.subr.mxu0 0.0
    %130 = vmatpush2.msra.mxu0 0.0
    %131 = vmatprep.subr.mxu0 0.0
    %132 = vmatpush2.msra.mxu0 0.0
    %133 = vmatprep.subr.mxu0 0.0
    %134 = vmatpush2.msra.mxu0 0.0
    %135 = vmatprep.subr.mxu0 0.0
    %136 = vmatpush2.msra.mxu0 0.0
    %137 = vmatprep.subr.mxu0 0.0
    %138 = vmatpush2.msra.mxu0 0.0
    %139 = vmatprep.mubr.f32.mxu0 0.0
    %140 = vmatmul.mubr.f32.gmra.mxu0 %v73
    %v141 = vpop.f32.mrf.mxu0
    %v142 = vadd.f32 0.0, %v141
    %v143 = vpop.f32.mrf.mxu0
    %144 = vdwg.mxu0
    %v145 = vld [vmem:[%s2] sm:$0xff]
    %v146 = vld [vmem:[%s2 + $0x8] sm:$0xff]
    %v147 = vld [vmem:[%s2 + $0x10] sm:$0xff]
    %v148 = vld [vmem:[%s2 + $0x18] sm:$0xff]
    %v149 = vld [vmem:[%s6] sm:$0xff]
    %v150 = vld [vmem:[%s6 + $0x8] sm:$0x3]
    %vm151 = vcmask 80896
    %v153 = vsel %vm151, %v145, 0
    %v156 = vsel %vm151, %v146, 0
    %v159 = vsel %vm151, %v147, 0
    %v162 = vsel %vm151, %v148, 0
    %vm164 = vcmask 1041408
    %v166 = vsel %vm164, %v150, 0
    %168 = vmatprep.subr.mxu0 0.0
    %169 = vmatpush1.msra.mxu0 0.0
    %170 = vmatprep.subr.mxu0 0.0
    %171 = vmatpush1.msra.mxu0 0.0
    %172 = vmatprep.subr.mxu0 0.0
    %173 = vmatpush1.msra.mxu0 0.0
    %174 = vmatprep.subr.mxu0 0.0
    %175 = vmatpush1.msra.mxu0 0.0
    %176 = vmatprep.subr.mxu0 0.0
    %177 = vmatpush1.msra.mxu0 0.0
    %178 = vmatprep.subr.mxu0 0.0
    %179 = vmatpush1.msra.mxu0 0.0
    %180 = vmatprep.subr.mxu0 0.0
    %181 = vmatpush1.msra.mxu0 0.0
    %182 = vmatprep.subr.mxu0 0.0
    %183 = vmatpush1.msra.mxu0 0.0
    %184 = vmatprep.subr.mxu0 0.0
    %185 = vmatpush1.msra.mxu0 0.0
    %186 = vmatprep.subr.mxu0 0.0
    %187 = vmatpush1.msra.mxu0 0.0
    %188 = vmatprep.subr.mxu0 0.0
    %189 = vmatpush1.msra.mxu0 0.0
    %190 = vmatprep.subr.mxu0 0.0
    %191 = vmatpush1.msra.mxu0 0.0
    %192 = vmatprep.subr.mxu0 0.0
    %193 = vmatpush1.msra.mxu0 0.0
    %194 = vmatprep.subr.mxu0 0.0
    %195 = vmatpush1.msra.mxu0 0.0
    %196 = vmatprep.subr.mxu0 0.0
    %197 = vmatpush1.msra.mxu0 %v166
    %198 = vmatprep.subr.mxu0 0.0
    %199 = vmatpush1.msra.mxu0 %v149
    %200 = vmatprep.subr.mxu0 0.0
    %201 = vmatpush2.msra.mxu0 0.0
    %202 = vmatprep.subr.mxu0 0.0
    %203 = vmatpush2.msra.mxu0 0.0
    %204 = vmatprep.subr.mxu0 0.0
    %205 = vmatpush2.msra.mxu0 0.0
    %206 = vmatprep.subr.mxu0 0.0
    %207 = vmatpush2.msra.mxu0 0.0
    %208 = vmatprep.subr.mxu0 0.0
    %209 = vmatpush2.msra.mxu0 0.0
    %210 = vmatprep.subr.mxu0 0.0
    %211 = vmatpush2.msra.mxu0 0.0
    %212 = vmatprep.subr.mxu0 0.0
    %213 = vmatpush2.msra.mxu0 0.0
    %214 = vmatprep.subr.mxu0 0.0
    %215 = vmatpush2.msra.mxu0 0.0
    %216 = vmatprep.subr.mxu0 0.0
    %217 = vmatpush2.msra.mxu0 0.0
    %218 = vmatprep.subr.mxu0 0.0
    %219 = vmatpush2.msra.mxu0 0.0
    %220 = vmatprep.subr.mxu0 0.0
    %221 = vmatpush2.msra.mxu0 0.0
    %222 = vmatprep.subr.mxu0 0.0
    %223 = vmatpush2.msra.mxu0 0.0
    %224 = vmatprep.subr.mxu0 0.0
    %225 = vmatpush2.msra.mxu0 0.0
    %226 = vmatprep.subr.mxu0 0.0
    %227 = vmatpush2.msra.mxu0 0.0
    %228 = vmatprep.subr.mxu0 0.0
    %229 = vmatpush2.msra.mxu0 0.0
    %230 = vmatprep.subr.mxu0 0.0
    %231 = vmatpush2.msra.mxu0 0.0
    %232 = vmatprep.mubr.f32.mxu0 0.0
    %233 = vmatmul.mubr.f32.gmra.mxu0 %v153
    %v234 = vpop.f32.mrf.mxu0
    %v235 = vadd.f32 0.0, %v234
    %v236 = vpop.f32.mrf.mxu0
    %237 = vmatprep.mubr.f32.mxu0 0.0
    %238 = vmatmul.mubr.f32.gmra.mxu0 %v156
    %v239 = vpop.f32.mrf.mxu0
    %v240 = vadd.f32 0.0, %v239
    %v241 = vpop.f32.mrf.mxu0
    %242 = vmatprep.mubr.f32.mxu0 0.0
    %243 = vmatmul.mubr.f32.gmra.mxu0 %v159
    %v244 = vpop.f32.mrf.mxu0
    %v245 = vadd.f32 0.0, %v244
    %v246 = vpop.f32.mrf.mxu0
    %247 = vmatprep.mubr.f32.mxu0 0.0
    %248 = vmatmul.mubr.f32.gmra.mxu0 %v162
    %v249 = vpop.f32.mrf.mxu0
    %v250 = vadd.f32 0.0, %v249
    %v251 = vpop.f32.mrf.mxu0
    %252 = vdwg.mxu0
    %v255 = vunpack.c.l.s4 1966171168
    %v256 = vunpack.c.0.s8 %v255
    %v257 = vlaneseq
    %v258 = vshrl.u32 %v257, 7
    %v259 = vsub.s32 %v256, %v258
    %v260 = vrot.slane %v142, %v259
    %v261 = vcombine.high %v260, %v260
    %v263 = vunpack.c.l.s4 1966171168
    %v264 = vunpack.c.0.s8 %v263
    %v265 = vlaneseq
    %v266 = vshrl.u32 %v265, 7
    %v267 = vsub.s32 %v264, %v266
    %v268 = vrot.slane %v260, %v267
    %v270 = vunpack.c.l.s4 1966171168
    %v271 = vunpack.c.0.s8 %v270
    %v272 = vlaneseq
    %v273 = vshrl.u32 %v272, 7
    %v274 = vsub.s32 %v271, %v273
    %v275 = vrot.slane %v261, %v274
    %v276 = vlaneseq
    %v277 = vshrl.u32 %v276, 7
    %v278 = vsub.s32 0, %v277
    %v279 = vrot.slane %v268, %v278
    %v280 = vlaneseq
    %v281 = vshrl.u32 %v280, 7
    %v282 = vsub.s32 0, %v281
    %v283 = vrot.slane %v275, %v282
    %v286 = vadd.f32 %v279, %v235
    %v287 = vadd.f32 %v279, %v240
    %v288 = vadd.f32 %v283, %v245
    %v289 = vadd.f32 %v283, %v250
    %v290 = vld [vmem:[%s3] sm:$0xff]
    %v291 = vld [vmem:[%s3 + $0x8] sm:$0xff]
    %v292 = vld [vmem:[%s3 + $0x10] sm:$0xff]
    %v293 = vld [vmem:[%s3 + $0x18] sm:$0xff]
    %v294 = vadd.f32 %v286, %v290
    %v295 = vadd.f32 %v287, %v291
    %v296 = vadd.f32 %v288, %v292
    %v297 = vadd.f32 %v289, %v293
    %v298 = vtanh.pop %v294
    %v299 = vtanh.pop %v295
    %v300 = vtanh.pop %v296
    %v301 = vtanh.pop %v297
    %v302 = vld [vmem:[%s7] sm:$0x1]
    %v304 = vlaneseq
    %v305 = vshrl.u32 %v304, 7
    %v306 = vsub.s32 0, %v305
    %v307 = vrot.slane %v302, %v306
    %v309 = vmul.f32 %v298, %v307
    %v310 = vmul.f32 %v299, %v307
    %v311 = vmul.f32 %v300, %v307
    %v312 = vmul.f32 %v301, %v307
    %v313 = vsel %vm71, %v309, 0.0
    %314 = vadd.xlane.f32.xlu0 %v313
    %v315 = vpop.xlane.xlu0 %314
    %v316 = vsel %vm71, %v310, 0.0
    %317 = vadd.xlane.f32.xlu0 %v316
    %v318 = vpop.xlane.xlu0 %317
    %v319 = vsel %vm71, %v311, 0.0
    %320 = vadd.xlane.f32.xlu0 %v319
    %v321 = vpop.xlane.xlu0 %320
    %v322 = vsel %vm71, %v312, 0.0
    %323 = vadd.xlane.f32.xlu0 %v322
    %v324 = vpop.xlane.xlu0 %323
    %v325 = vlaneseq
    %v326 = vand.u32 %v325, 127
    %v327 = vlaneseq
    %v328 = vshrl.u32 %v327, 7
    %vm329 = vcmp.eq.s32.totalorder %v328, 0
    %s330 = sld [smem:[#allocation3 + %s65]]
    %v331 = vstv %s330
    %v332 = vsel %vm329, %v331, 16
    %vm333 = vcmp.eq.s32.totalorder %v328, 1
    %s334 = sadd.s32 %s65, 1
    %s335 = sld [smem:[#allocation3 + %s334]]
    %v336 = vstv %s335
    %v337 = vsel %vm333, %v336, %v332
    %vm338 = vcmp.ge.s32.totalorder %v326, %v337
    %v343 = vlaneseq
    %v344 = vshrl.u32 %v343, 7
    %v345 = vsub.s32 %v326, %v344
    %v346 = vrot.slane %v315, %v345
    %v347 = vadd.s32 %v326, 4294967288
    %v348 = vlaneseq
    %v349 = vshrl.u32 %v348, 7
    %v350 = vsub.s32 %v347, %v349
    %v351 = vrot.slane %v318, %v350
    %vm352 = vcmask 130112
    %v353 = vsel %vm352, %v351, %v346
    %v354 = vlaneseq
    %v355 = vshrl.u32 %v354, 7
    %v356 = vsub.s32 %v326, %v355
    %v357 = vrot.slane %v321, %v356
    %v358 = vlaneseq
    %v359 = vshrl.u32 %v358, 7
    %v360 = vsub.s32 %v347, %v359
    %v361 = vrot.slane %v324, %v360
    %v362 = vsel %vm352, %v361, %v357
    %vm363 = vcmask 1041409
    %v364 = vsel %vm363, %v362, %v353
    %v366 = vsel %vm338, -1e+30, %v364
    %vm367 = vcmask 123904
    %v368 = vsel %vm367, %v366, -inf
    %369 = vmax.xlane.f32.xlu0 %v368
    %v370 = vpop.xlane.xlu0 %369
    %v371 = vsub.f32 %v366, %v370
    %v372 = vmul.f32 %v371, 1.442695
    %v373 = vpow.pop %v372
    %v374 = vsel %vm367, %v373, 0.0
    %375 = vadd.xlane.f32.xlu0 %v374
    %v376 = vpop.xlane.xlu0 %375
    %v377 = vrcp.pop %v376
    %v378 = vmul.f32 %v373, %v377
    %v381 = vunpack.c.l.s4 1966171168
    %v382 = vunpack.c.0.s8 %v381
    %v383 = vlaneseq
    %v384 = vshrl.u32 %v383, 7
    %v385 = vsub.s32 %v382, %v384
    %v386 = vrot.slane %v378, %v385
    %v387 = vcombine.high %v386, %v386
    %v389 = vunpack.c.l.s4 1966171168
    %v390 = vunpack.c.0.s8 %v389
    %v391 = vlaneseq
    %v392 = vshrl.u32 %v391, 7
    %v393 = vsub.s32 %v390, %v392
    %v394 = vrot.slane %v386, %v393
    %v396 = vunpack.c.l.s4 1966171168
    %v397 = vunpack.c.0.s8 %v396
    %v398 = vlaneseq
    %v399 = vshrl.u32 %v398, 7
    %v400 = vsub.s32 %v397, %v399
    %v401 = vrot.slane %v387, %v400
    %v402 = vld [vmem:[#allocation4] sm:$0xff]
    %v403 = vld [vmem:[#allocation4 + $0x8] sm:$0xff]
    %v404 = vld [vmem:[#allocation4 + $0x10] sm:$0xff]
    %v405 = vld [vmem:[#allocation4 + $0x18] sm:$0xff]
    %vm406 = vcmask 130048
    %v407 = vsel %vm406, %v394, 0
    %409 = vmatprep.subr.mxu0 0.0
    %410 = vmatpush1.msra.mxu0 0.0
    %411 = vmatprep.subr.mxu0 0.0
    %412 = vmatpush1.msra.mxu0 0.0
    %413 = vmatprep.subr.mxu0 0.0
    %414 = vmatpush1.msra.mxu0 0.0
    %415 = vmatprep.subr.mxu0 0.0
    %416 = vmatpush1.msra.mxu0 0.0
    %417 = vmatprep.subr.mxu0 0.0
    %418 = vmatpush1.msra.mxu0 0.0
    %419 = vmatprep.subr.mxu0 0.0
    %420 = vmatpush1.msra.mxu0 0.0
    %421 = vmatprep.subr.mxu0 0.0
    %422 = vmatpush1.msra.mxu0 0.0
    %423 = vmatprep.subr.mxu0 0.0
    %424 = vmatpush1.msra.mxu0 0.0
    %425 = vmatprep.subr.mxu0 0.0
    %426 = vmatpush1.msra.mxu0 0.0
    %427 = vmatprep.subr.mxu0 0.0
    %428 = vmatpush1.msra.mxu0 0.0
    %429 = vmatprep.subr.mxu0 0.0
    %430 = vmatpush1.msra.mxu0 0.0
    %431 = vmatprep.subr.mxu0 0.0
    %432 = vmatpush1.msra.mxu0 0.0
    %433 = vmatprep.subr.mxu0 0.0
    %434 = vmatpush1.msra.mxu0 0.0
    %435 = vmatprep.subr.mxu0 0.0
    %436 = vmatpush1.msra.mxu0 0.0
    %437 = vmatprep.subr.mxu0 0.0
    %438 = vmatpush1.msra.mxu0 %v403
    %439 = vmatprep.subr.mxu0 0.0
    %440 = vmatpush1.msra.mxu0 %v402
    %441 = vmatprep.subr.mxu0 0.0
    %442 = vmatpush2.msra.mxu0 0.0
    %443 = vmatprep.subr.mxu0 0.0
    %444 = vmatpush2.msra.mxu0 0.0
    %445 = vmatprep.subr.mxu0 0.0
    %446 = vmatpush2.msra.mxu0 0.0
    %447 = vmatprep.subr.mxu0 0.0
    %448 = vmatpush2.msra.mxu0 0.0
    %449 = vmatprep.subr.mxu0 0.0
    %450 = vmatpush2.msra.mxu0 0.0
    %451 = vmatprep.subr.mxu0 0.0
    %452 = vmatpush2.msra.mxu0 0.0
    %453 = vmatprep.subr.mxu0 0.0
    %454 = vmatpush2.msra.mxu0 0.0
    %455 = vmatprep.subr.mxu0 0.0
    %456 = vmatpush2.msra.mxu0 0.0
    %457 = vmatprep.subr.mxu0 0.0
    %458 = vmatpush2.msra.mxu0 0.0
    %459 = vmatprep.subr.mxu0 0.0
    %460 = vmatpush2.msra.mxu0 0.0
    %461 = vmatprep.subr.mxu0 0.0
    %462 = vmatpush2.msra.mxu0 0.0
    %463 = vmatprep.subr.mxu0 0.0
    %464 = vmatpush2.msra.mxu0 0.0
    %465 = vmatprep.subr.mxu0 0.0
    %466 = vmatpush2.msra.mxu0 0.0
    %467 = vmatprep.subr.mxu0 0.0
    %468 = vmatpush2.msra.mxu0 0.0
    %469 = vmatprep.subr.mxu0 0.0
    %470 = vmatpush2.msra.mxu0 0.0
    %471 = vmatprep.subr.mxu0 0.0
    %472 = vmatpush2.msra.mxu0 0.0
    %473 = vmatprep.mubr.f32.mxu0 0.0
    %474 = vmatmul.mubr.f32.gmra.mxu0 %v407
    %v475 = vpop.f32.mrf.mxu0
    %v476 = vadd.f32 0.0, %v475
    %v477 = vpop.f32.mrf.mxu0
    %478 = vdwg.mxu0
    %v479 = vsel %vm406, %v401, 0
    %481 = vmatprep.subr.mxu0 0.0
    %482 = vmatpush1.msra.mxu0 0.0
    %483 = vmatprep.subr.mxu0 0.0
    %484 = vmatpush1.msra.mxu0 0.0
    %485 = vmatprep.subr.mxu0 0.0
    %486 = vmatpush1.msra.mxu0 0.0
    %487 = vmatprep.subr.mxu0 0.0
    %488 = vmatpush1.msra.mxu0 0.0
    %489 = vmatprep.subr.mxu0 0.0
    %490 = vmatpush1.msra.mxu0 0.0
    %491 = vmatprep.subr.mxu0 0.0
    %492 = vmatpush1.msra.mxu0 0.0
    %493 = vmatprep.subr.mxu0 0.0
    %494 = vmatpush1.msra.mxu0 0.0
    %495 = vmatprep.subr.mxu0 0.0
    %496 = vmatpush1.msra.mxu0 0.0
    %497 = vmatprep.subr.mxu0 0.0
    %498 = vmatpush1.msra.mxu0 0.0
    %499 = vmatprep.subr.mxu0 0.0
    %500 = vmatpush1.msra.mxu0 0.0
    %501 = vmatprep.subr.mxu0 0.0
    %502 = vmatpush1.msra.mxu0 0.0
    %503 = vmatprep.subr.mxu0 0.0
    %504 = vmatpush1.msra.mxu0 0.0
    %505 = vmatprep.subr.mxu0 0.0
    %506 = vmatpush1.msra.mxu0 0.0
    %507 = vmatprep.subr.mxu0 0.0
    %508 = vmatpush1.msra.mxu0 0.0
    %509 = vmatprep.subr.mxu0 0.0
    %510 = vmatpush1.msra.mxu0 %v405
    %511 = vmatprep.subr.mxu0 0.0
    %512 = vmatpush1.msra.mxu0 %v404
    %513 = vmatprep.subr.mxu0 0.0
    %514 = vmatpush2.msra.mxu0 0.0
    %515 = vmatprep.subr.mxu0 0.0
    %516 = vmatpush2.msra.mxu0 0.0
    %517 = vmatprep.subr.mxu0 0.0
    %518 = vmatpush2.msra.mxu0 0.0
    %519 = vmatprep.subr.mxu0 0.0
    %520 = vmatpush2.msra.mxu0 0.0
    %521 = vmatprep.subr.mxu0 0.0
    %522 = vmatpush2.msra.mxu0 0.0
    %523 = vmatprep.subr.mxu0 0.0
    %524 = vmatpush2.msra.mxu0 0.0
    %525 = vmatprep.subr.mxu0 0.0
    %526 = vmatpush2.msra.mxu0 0.0
    %527 = vmatprep.subr.mxu0 0.0
    %528 = vmatpush2.msra.mxu0 0.0
    %529 = vmatprep.subr.mxu0 0.0
    %530 = vmatpush2.msra.mxu0 0.0
    %531 = vmatprep.subr.mxu0 0.0
    %532 = vmatpush2.msra.mxu0 0.0
    %533 = vmatprep.subr.mxu0 0.0
    %534 = vmatpush2.msra.mxu0 0.0
    %535 = vmatprep.subr.mxu0 0.0
    %536 = vmatpush2.msra.mxu0 0.0
    %537 = vmatprep.subr.mxu0 0.0
    %538 = vmatpush2.msra.mxu0 0.0
    %539 = vmatprep.subr.mxu0 0.0
    %540 = vmatpush2.msra.mxu0 0.0
    %541 = vmatprep.subr.mxu0 0.0
    %542 = vmatpush2.msra.mxu0 0.0
    %543 = vmatprep.subr.mxu0 0.0
    %544 = vmatpush2.msra.mxu0 0.0
    %545 = vmatprep.mubr.f32.mxu0 0.0
    %546 = vmatmul.mubr.f32.gmra.mxu0 %v479
    %v547 = vpop.f32.mrf.mxu0
    %v548 = vadd.f32 0.0, %v547
    %v549 = vpop.f32.mrf.mxu0
    %550 = vdwg.mxu0
    %v553 = vrot.slane %v548, 7
    %v554 = vsel %vm363, %v553, %v476
    %vm556 = vcmask 254976
    %557 = vst.msk [vmem:[#allocation9] sm:$0x3] %vm556, %v554
    %558 = vst.msk [vmem:[#allocation10] sm:$0x3] %vm367, %v378
    // Predicated region
    $region38: #{tpu_custom_call.1} parent=1 // pred_check
      _
    $region39: #{tpu_custom_call.1} parent=1 // pred_check_branch
      %560 = sbr.rel (0) target = $region41
    $region40: #{tpu_custom_call.1} parent=1 // pred_region
      %s562 = ssub.s32 32, 32
      %563 = vsyncadd [#allocation6], %s562
      %s565 = sshll.u32 [#allocation9], 4
      %s566 = int_to_ptr.vmem [resolvable:$true] %s565
      %568 = dma.vmem_to_hbm [thread:$0]  %s566, 32, %s8, [#allocation6]
    $region41: #{tpu_custom_call.1} parent=1 // pred_fallthru
      _
    // Predicated region
    $region42: #{tpu_custom_call.1} parent=1 // pred_check
      _
    $region43: #{tpu_custom_call.1} parent=1 // pred_check_branch
      %570 = sbr.rel (0) target = $region45
    $region44: #{tpu_custom_call.1} parent=1 // pred_region
      %s572 = ssub.s32 32, 32
      %573 = vsyncadd [#allocation11], %s572
      %s575 = sshll.u32 [#allocation10], 4
      %s576 = int_to_ptr.vmem [resolvable:$true] %s575
      %578 = dma.vmem_to_hbm [thread:$0]  %s576, 32, %s9, [#allocation11]
    $region45: #{tpu_custom_call.1} parent=1 // pred_fallthru
      _
    // Predicated region
    $region46: #{tpu_custom_call.1} parent=1 // pred_check
      _
    $region47: #{tpu_custom_call.1} parent=1 // pred_check_branch
      %580 = sbr.rel (0) target = $region49
    $region48: #{tpu_custom_call.1} parent=1 // pred_region
      %581 = dma.done [#allocation6], 32
    $region49: #{tpu_custom_call.1} parent=1 // pred_fallthru
      _
    // Predicated region
    $region50: #{tpu_custom_call.1} parent=1 // pred_check
      _
    $region51: #{tpu_custom_call.1} parent=1 // pred_check_branch
      %583 = sbr.rel (0) target = $region53
    $region52: #{tpu_custom_call.1} parent=1 // pred_region
      %584 = dma.done [#allocation11], 32
    $region53: #{tpu_custom_call.1} parent=1 // pred_fallthru
      _
    %585 = vsyncpa [#allocation5], 1
    %586 = vsyncpa [#allocation8], 1
    %587 = vsyncpa [#allocation6], 1
    %588 = vsyncpa [#allocation11], 1

</llo_original>
